<compile_context>
chip_gen: v6e
topology: v6e:2x2x1
jax: 0.10.0
libtpu: 0.0.40
codegen_flags: <defaults>
</compile_context>

<pallas_src>
import functools

import jax
import jax.numpy as jnp
from jax import lax
from jax.experimental import pallas as pl
from jax.experimental.pallas import tpu as pltpu


def _round_up(x, m):
    return ((x + m - 1) // m) * m


# ----------------------------------------------------------------------------
# Kernel 1: KDE-based entropy of each patch (EUP/exp-bound hot path)
#   layout: patches along lanes
#     minmax : SMEM (2,) f32        [global min, global max]
#     vals   : VMEM (Lp, T) f32     pixels x patch-tile
#     ent    : VMEM (1, T)  f32     per-patch entropy (lane-dense store)
#     pdf    : VMEM (n_bins, T) f32 scratch (per-bin means)
# ----------------------------------------------------------------------------
def _entropy_kde_kernel(minmax_ref, vals_ref, ent_ref, pdf_ref, *, n_bins, sigma, epsilon):
    vmin = minmax_ref[0]
    vmax = minmax_ref[1]
    denom = vmax - vmin
    # torch reference divides by (max - min) with no epsilon; guard only the exact
    # degenerate constant-input case (torch would emit NaN there).
    denom = jnp.where(denom == 0.0, jnp.float32(1.0), denom)

    lp = vals_ref.shape[0]
    inv_lp = jnp.float32(1.0 / lp)

    # Fold the global normalization into the per-bin residual:
    #   (vn - bin_b) / sigma = (v - (vmin + bin_b * denom)) / (denom * sigma)
    inv_ds = jnp.float32(1.0) / (denom * jnp.float32(sigma))
    coeff = jnp.float32(-0.5) * inv_ds * inv_ds
    bin_step = denom * jnp.float32(1.0 / (n_bins - 1))

    def bin_body(b, carry):
        center = vmin + b.astype(jnp.float32) * bin_step      # scalar
        v = vals_ref[...]                                     # (Lp, T)
        d = v - center
        kv = jnp.exp(coeff * (d * d))                         # (Lp, T), EUP-bound
        # per-bin mean over pixels -> one lane-dense row of the pdf scratch
        pdf_ref[pl.ds(b, 1), :] = jnp.sum(kv, axis=0, keepdims=True) * inv_lp
        return carry

    lax.fori_loop(0, n_bins, bin_body, 0)

    pdf = pdf_ref[...]                                        # (n_bins, T)
    norm = jnp.sum(pdf, axis=0, keepdims=True) + jnp.float32(epsilon)
    pdf = pdf / norm + jnp.float32(epsilon)
    ent_ref[...] = -jnp.sum(pdf * jnp.log(pdf), axis=0, keepdims=True)   # (1, T)


def entropy_kde_pallas(vals_2d, *, n_bins=64, sigma=0.01, epsilon=1e-19, tile=512):
    np_rows, lp = vals_2d.shape
    vals_2d = vals_2d.astype(jnp.float32)

    # global min/max hoisted here (torch normalizes over the WHOLE tensor) and
    # passed into the kernel as SMEM scalars so per-tile normalization matches.
    minmax = jnp.stack([jnp.min(vals_2d), jnp.max(vals_2d)]).astype(jnp.float32)

    # Put patches on lanes: lane-dense compute + lane-dense output stores.
    vals_t = vals_2d.T                                        # (Lp, NP)
    t = min(tile, _round_up(np_rows, 128))
    np_pad = _round_up(np_rows, t)
    if np_pad != np_rows:
        vals_t = jnp.pad(vals_t, ((0, 0), (0, np_pad - np_rows)))

    kernel = functools.partial(
        _entropy_kde_kernel, n_bins=n_bins, sigma=float(sigma), epsilon=float(epsilon)
    )
    # NOTE: exp kept in f32 for v5e compatibility / reference fidelity.
    ent = pl.pallas_call(
        kernel,
        out_shape=jax.ShapeDtypeStruct((1, np_pad), jnp.float32),
        grid=(np_pad // t,),
        in_specs=[
            pl.BlockSpec(memory_space=pltpu.MemorySpace.SMEM),   # [vmin, vmax]
            pl.BlockSpec((lp, t), lambda i: (0, i)),             # pixel x patch tile
        ],
        out_specs=pl.BlockSpec((1, t), lambda i: (0, i)),
        scratch_shapes=[pltpu.VMEM((n_bins, t), jnp.float32)],
        compiler_params=pltpu.CompilerParams(
            dimension_semantics=("parallel",),      # shards row tiles across TCs (v7x)
            vmem_limit_bytes=32 * 1024 * 1024,       # small tiles; fits v7x's 64 MiB easily
        ),
    )(minmax, vals_t)
    return ent[0, :np_rows]


# ----------------------------------------------------------------------------
# Kernel 2: per-sample row gather (x_masked = gather(x, ids_keep))
#   One grid step per sample; manual DMA pipeline with `dma_depth` in-flight
#   row copies HBM -> VMEM, then one lane-dense (K, D) output block store.
# ----------------------------------------------------------------------------
_GATHER_DMA_DEPTH = 8


def _gather_rows_kernel(ids_ref, x_hbm, out_ref, row_buf, sem, *, dma_depth, num_keep):
    # ids_ref : SMEM (N*K,) int32 (scalar prefetch, flattened to keep SMEM small)
    # x_hbm   : ANY  (N, L, D)
    # out_ref : VMEM (1, K, D) output block for sample n
    # row_buf : VMEM (K, D) scratch gather destination
    # sem     : DMA semaphores (dma_depth,)
    n = pl.program_id(0)

    def start(k, slot):
        row = ids_ref[n * num_keep + k]
        pltpu.make_async_copy(x_hbm.at[n, row], row_buf.at[k], sem.at[slot]).start()

    def finish(k, slot):
        # descriptor only needs matching transfer size + semaphore for the wait
        pltpu.make_async_copy(x_hbm.at[n, 0], row_buf.at[k], sem.at[slot]).wait()

    # prime the pipeline with dma_depth row fetches in flight
    for d in range(dma_depth):
        start(d, d)

    def body(k, carry):
        slot = k % dma_depth
        finish(k, slot)

        @pl.when(k + dma_depth < num_keep)
        def _():
            start(k + dma_depth, slot)

        return carry

    lax.fori_loop(0, num_keep, body, 0)
    out_ref[0, :, :] = row_buf[...]


def gather_rows_pallas(x, ids):
    # x: (N, L, D), ids: (N, K) int32 -> out: (N, K, D)
    N, L, D = x.shape
    K = ids.shape[1]
    depth = max(1, min(_GATHER_DMA_DEPTH, K))
    kernel = functools.partial(_gather_rows_kernel, dma_depth=depth, num_keep=K)
    return pl.pallas_call(
        kernel,
        out_shape=jax.ShapeDtypeStruct((N, K, D), x.dtype),
        grid_spec=pltpu.PrefetchScalarGridSpec(
            num_scalar_prefetch=1,
            grid=(N,),
            in_specs=[pl.BlockSpec(memory_space=pl.ANY)],          # x stays in HBM
            out_specs=pl.BlockSpec((1, K, D), lambda n, ids: (n, 0, 0)),
            scratch_shapes=[
                pltpu.VMEM((K, D), x.dtype),
                pltpu.SemaphoreType.DMA((depth,)),
            ],
        ),
        compiler_params=pltpu.CompilerParams(
            dimension_semantics=("parallel",),   # per-sample steps are independent
        ),
    )(ids.reshape(-1).astype(jnp.int32), x)


# ----------------------------------------------------------------------------
# MaskingModule (JAX / Pallas)
# ----------------------------------------------------------------------------
class MaskingModule:
    def __init__(self, epsilon=1e-19):
        self.epsilon = epsilon

    def __call__(self, x, img_pat, masking_type, **masking_args):
        if hasattr(self, masking_type):
            return getattr(self, masking_type)(x, img_pat, **masking_args)
        raise ValueError(f"Unsupported mask type: {masking_type}")

    # --- masking strategies -------------------------------------------------
    def random_masking(self, x, img_pat, masking_ratio=0.75, rng=None, **kwargs):
        N, L, D = x.shape
        len_keep = int(L * (1 - masking_ratio))
        if rng is None:
            rng = jax.random.PRNGKey(0)
        noise = jax.random.uniform(rng, (N, L), dtype=jnp.float32)
        ids_shuffle = jnp.argsort(noise, axis=1)             # glue: no Pallas argsort
        ids_restore = jnp.argsort(ids_shuffle, axis=1)
        ids_keep = ids_shuffle[:, :len_keep].astype(jnp.int32)
        x_masked = gather_rows_pallas(x, ids_keep)            # Pallas gather kernel
        mask = jnp.ones((N, L), jnp.float32).at[:, :len_keep].set(0.0)
        mask = jnp.take_along_axis(mask, ids_restore, axis=1)
        return x_masked, mask, ids_restore

    def entropy_kde_masking(self, x, img_pat, masking_ratio=0.75, **kwargs):
        N, L, D = x.shape
        len_keep = int(L * (1 - masking_ratio))
        entropies = self.entropy_kde(img_pat)                 # Pallas KDE-entropy kernel
        # NOTE: tie-break order of argsort(-e) may differ from torch's descending
        # argsort for exactly-tied entropies (values themselves match).
        ids_shuffle = jnp.argsort(-entropies, axis=1)
        ids_restore = jnp.argsort(ids_shuffle, axis=1)
        ids_keep = ids_shuffle[:, :len_keep].astype(jnp.int32)
        x_masked = gather_rows_pallas(x, ids_keep)            # Pallas gather kernel
        mask = jnp.ones((N, L), jnp.float32).at[:, :len_keep].set(0.0)
        mask = jnp.take_along_axis(mask, ids_restore, axis=1)
        return x_masked, mask, ids_restore

    # TODO(synk): entropy_masking / entropy_masking_threshold rely on torch.unique +
    # scatter_add_ histograms and host-side .item(); not ported.
    # TODO(synk): entropy_masking_bins uses host-side torch.randperm and a
    # data-dependent boolean reshape; not ported.
    # TODO(synk): mean_frequency / frequency_masking use the removed legacy
    # torch.fft(signal_ndim=2) API; not ported.
    # TODO(synk): random_masking_variable samples its ratio host-side
    # (torch.rand(1).item()); not ported.

    # --- entropy via kernel density estimation (Pallas) ----------------------
    def entropy_kde(self, values, n_bins=64, sigma=0.01):
        N, P, Lp = values.shape
        vals_2d = values.reshape(N * P, Lp)
        ent = entropy_kde_pallas(
            vals_2d, n_bins=n_bins, sigma=sigma, epsilon=self.epsilon
        )
        return ent.reshape(N, P)


# ----------------------------------------------------------------------------
# Pure-JAX reference for the KDE entropy (matches the torch code; small shapes)
# ----------------------------------------------------------------------------
def _entropy_kde_ref(values, n_bins=64, sigma=0.01, epsilon=1e-19):
    values = values.astype(jnp.float32)
    bins = jnp.linspace(0.0, 1.0, n_bins)
    vmin = jnp.min(values)
    vmax = jnp.max(values)
    vn = (values - vmin) / (vmax - vmin)
    residuals = vn[:, :, None, :] - bins[None, None, :, None]
    kv = jnp.exp(-0.5 * (residuals / sigma) ** 2)
    pdf = jnp.mean(kv, axis=3)
    norm = jnp.sum(pdf, axis=2, keepdims=True) + epsilon
    pdf = pdf / norm + epsilon
    return -jnp.sum(pdf * jnp.log(pdf), axis=-1)


# ----------------------------------------------------------------------------
# Demo / smoke test
# ----------------------------------------------------------------------------
if __name__ == "__main__":
    key = jax.random.PRNGKey(0)
    k1, k2, k3 = jax.random.split(key, 3)

    N, L, D = 2, 16, 32          # batch, num_patches, embed dim
    Lp = 192                     # pixels per patch (e.g. 8x8x3)

    x = jax.random.normal(k1, (N, L, D), dtype=jnp.float32)
    img_pat = jax.random.uniform(k2, (N, L, Lp), dtype=jnp.float32)

    module = MaskingModule()

    # entropy-KDE masking (hot path: Pallas KDE-entropy kernel + Pallas gather)
    x_masked, mask, ids_restore = module(
        x, img_pat, "entropy_kde_masking", masking_ratio=0.75
    )
    jax.block_until_ready((x_masked, mask, ids_restore))
    assert x_masked.shape == (N, int(L * 0.25), D)
    assert mask.shape == (N, L)
    assert ids_restore.shape == (N, L)

    # numerical check: Pallas KDE entropy vs pure-JAX reference
    ent_pallas = module.entropy_kde(img_pat)
    ent_ref = _entropy_kde_ref(img_pat)
    ent_err = float(jnp.max(jnp.abs(ent_pallas - ent_ref)))
    assert ent_err < 1e-3, f"entropy mismatch: {ent_err}"

    # exactness check: Pallas gather vs take_along_axis
    ids_chk = jnp.argsort(-ent_ref, axis=1)[:, : int(L * 0.25)].astype(jnp.int32)
    g_pallas = gather_rows_pallas(x, ids_chk)
    g_ref = jnp.take_along_axis(x, ids_chk[..., None], axis=1)
    assert float(jnp.max(jnp.abs(g_pallas - g_ref))) == 0.0

    # random masking (Pallas gather for x_masked)
    x_masked2, mask2, ids_restore2 = module(
        x, img_pat, "random_masking", masking_ratio=0.5, rng=k3
    )
    jax.block_until_ready((x_masked2, mask2, ids_restore2))
    assert x_masked2.shape == (N, int(L * 0.5), D)

    print("KERNEL_OK")
</pallas_src>

<mosaic_0001>
module attributes {stable_mosaic.version = 11 : i64} {
  func.func @_entropy_kde_kernel(%arg0: i32, %arg1: memref<2xf32, #tpu.memory_space<smem>>, %arg2: memref<192x128xf32, #tpu.memory_space<vmem>>, %arg3: memref<1x128xf32, #tpu.memory_space<vmem>>, %arg4: memref<64x128xf32, #tpu.memory_space<vmem>>) attributes {dimension_semantics = [#tpu.dimension_semantics<parallel>], iteration_bounds = array<i64: 1>, scalar_prefetch = 0 : i64, scratch_operands = 1 : i64, tpu.core_type = #tpu.core_type<tc>, window_params = [{transform_indices = @transform_0, window_bounds = array<i64: 2>}, {transform_indices = @transform_1, window_bounds = array<i64: 192, 128>}, {transform_indices = @transform_2, window_bounds = array<i64: 1, 128>}]} {
    %c0 = arith.constant 0 : index
    %0 = memref.load %arg1[%c0] : memref<2xf32, #tpu.memory_space<smem>>
    %c1 = arith.constant 1 : index
    %1 = memref.load %arg1[%c1] : memref<2xf32, #tpu.memory_space<smem>>
    %2 = arith.subf %1, %0 : f32
    %cst = arith.constant 0.000000e+00 : f32
    %3 = arith.cmpf oeq, %2, %cst : f32
    %cst_0 = arith.constant 1.000000e+00 : f32
    %4 = arith.select %3, %cst_0, %2 : f32
    %cst_1 = arith.constant 0.00999999977 : f32
    %5 = arith.mulf %4, %cst_1 : f32
    %cst_2 = arith.constant 1.000000e+00 : f32
    %6 = arith.divf %cst_2, %5 : f32
    %cst_3 = arith.constant -5.000000e-01 : f32
    %7 = arith.mulf %cst_3, %6 : f32
    %8 = arith.mulf %7, %6 : f32
    %cst_4 = arith.constant 0.0158730168 : f32
    %9 = arith.mulf %4, %cst_4 : f32
    %cst_5 = arith.constant 0.00520833349 : f32
    %c0_i32 = arith.constant 0 : i32
    %c64_i32 = arith.constant 64 : i32
    %10 = arith.addi %c0_i32, %c64_i32 : i32
    %c1_i32 = arith.constant 1 : i32
    scf.for %arg5 = %c0_i32 to %10 step %c1_i32  : i32 {
      %27 = arith.sitofp %arg5 : i32 to f32
      %28 = arith.mulf %27, %9 : f32
      %29 = arith.addf %0, %28 : f32
      %c0_16 = arith.constant 0 : index
      %c0_17 = arith.constant 0 : index
      %30 = vector.load %arg2[%c0_16, %c0_17] : memref<192x128xf32, #tpu.memory_space<vmem>>, vector<192x128xf32>
      %31 = vector.broadcast %29 : f32 to vector<192x128xf32>
      %32 = arith.subf %30, %31 : vector<192x128xf32>
      %33 = arith.mulf %32, %32 : vector<192x128xf32>
      %34 = vector.broadcast %8 : f32 to vector<192x128xf32>
      %35 = arith.mulf %34, %33 : vector<192x128xf32>
      %36 = math.exp %35 : vector<192x128xf32>
      %cst_18 = arith.constant dense<0.000000e+00> : vector<128xf32>
      %37 = vector.multi_reduction <add>, %36, %cst_18 [0] : vector<192x128xf32> to vector<128xf32>
      %38 = vector.shape_cast %37 : vector<128xf32> to vector<1x128xf32>
      %39 = vector.broadcast %cst_5 : f32 to vector<1x128xf32>
      %40 = arith.mulf %38, %39 : vector<1x128xf32>
      %41 = arith.index_cast %arg5 : i32 to index
      %c0_19 = arith.constant 0 : index
      %42 = vector.load %arg4[%41, %c0_19] : memref<64x128xf32, #tpu.memory_space<vmem>>, vector<1x128xf32>
      tpu.vector_store %arg4[%41, %c0_19], %40 {strides = array<i32>} : memref<64x128xf32, #tpu.memory_space<vmem>>, vector<1x128xf32>,
    }
    %c64_i32_6 = arith.constant 64 : i32
    %c0_7 = arith.constant 0 : index
    %c0_8 = arith.constant 0 : index
    %11 = vector.load %arg4[%c0_7, %c0_8] : memref<64x128xf32, #tpu.memory_space<vmem>>, vector<64x128xf32>
    %cst_9 = arith.constant dense<0.000000e+00> : vector<128xf32>
    %12 = vector.multi_reduction <add>, %11, %cst_9 [0] : vector<64x128xf32> to vector<128xf32>
    %13 = vector.shape_cast %12 : vector<128xf32> to vector<1x128xf32>
    %cst_10 = arith.constant 9.99999968E-20 : f32
    %14 = vector.broadcast %cst_10 : f32 to vector<1x128xf32>
    %15 = arith.addf %13, %14 : vector<1x128xf32>
    %16 = vector.broadcast %15 : vector<1x128xf32> to vector<64x128xf32>
    %17 = arith.divf %11, %16 : vector<64x128xf32>
    %cst_11 = arith.constant 9.99999968E-20 : f32
    %18 = vector.broadcast %cst_11 : f32 to vector<64x128xf32>
    %19 = arith.addf %17, %18 : vector<64x128xf32>
    %20 = math.log %19 : vector<64x128xf32>
    %21 = arith.mulf %19, %20 : vector<64x128xf32>
    %cst_12 = arith.constant dense<0.000000e+00> : vector<128xf32>
    %22 = vector.multi_reduction <add>, %21, %cst_12 [0] : vector<64x128xf32> to vector<128xf32>
    %23 = vector.shape_cast %22 : vector<128xf32> to vector<1x128xf32>
    %cst_13 = arith.constant 0.000000e+00 : f32
    %24 = vector.broadcast %cst_13 : f32 to vector<1x128xf32>
    %25 = arith.subf %24, %23 : vector<1x128xf32>
    %c0_14 = arith.constant 0 : index
    %c0_15 = arith.constant 0 : index
    %26 = vector.load %arg3[%c0_14, %c0_15] : memref<1x128xf32, #tpu.memory_space<vmem>>, vector<1x128xf32>
    tpu.vector_store %arg3[%c0_14, %c0_15], %25 {strides = array<i32>} : memref<1x128xf32, #tpu.memory_space<vmem>>, vector<1x128xf32>,
    return
  }
  func.func @transform_0(%arg0: i32) -> i32 {
    %c0_i32 = arith.constant 0 : i32
    %c0_i32_0 = arith.constant 0 : i32
    return %c0_i32 : i32
  }
  func.func @transform_1(%arg0: i32) -> (i32, i32) {
    %c0_i32 = arith.constant 0 : i32
    %c0_i32_0 = arith.constant 0 : i32
    return %c0_i32, %arg0 : i32, i32
  }
  func.func @transform_2(%arg0: i32) -> (i32, i32) {
    %c0_i32 = arith.constant 0 : i32
    %c0_i32_0 = arith.constant 0 : i32
    return %c0_i32, %arg0 : i32, i32
  }
}

</mosaic_0001>

<llo_original>
// kernel: tpu_custom_call.1
$region0: #{tpu_custom_call.1}
  #allocation0 [shape = 'u32[]', space=smem, size = 0x4, offset = 0x4, fixed_abs, tag = 'smem constant byte address 0x4 - core index']
  #allocation1 [shape = 'u32[144,128]{1,0:T(1,128)}', space=vmem, size = 0x12000, scoped, tag = 'internal scratch']
  #allocation2 [shape = 'f32[64,128]{1,0:T(8,128)}', space=vmem, size = 0x8000, scoped, tag = 'scratch operand']
  %s0 = inlined_call_operand.hbm [shape: f32[2], index: 0, kind: input, shape index: {}]
  %s1 = inlined_call_operand.hbm [shape: f32[192,128], index: 1, kind: input, shape index: {}]
  %s2 = inlined_call_operand.hbm [shape: f32[1,128], index: 2, kind: output, shape index: {}]
  %s3 = sld [smem:[#allocation0]]
  $region33: #{tpu_custom_call.1} parent=0
    _
  %s5 = ssub.s32 1, %s3
  %s6 = scalar_select 0, %s5, %s3
  $region1: #{tpu_custom_call.1} parent=0
    #allocation3 [shape = 'u8[512]{0}', space=smem, size = 0x200, scoped, tag = 'input window, operand 0, single buffered']
    #allocation4 [shape = 's32[1]{0}', space=sflag, size = 0x4, scoped, tag = 'scoped memory for tpu_custom_call.1']
    #allocation5 [shape = 's32[1]{0}', space=sflag, size = 0x4, scoped, tag = 'scoped memory for tpu_custom_call.1']
    #allocation6 [shape = 's32[1]{0}', space=sflag, size = 0x4, scoped, tag = 'scoped memory for tpu_custom_call.1']
    #allocation7 [shape = 'u8[98304]{0}', space=vmem, size = 0x18000, scoped, tag = 'input window, operand 1, single buffered']
    #allocation8 [shape = 'u8[512]{0}', space=vmem, size = 0x400, scoped, tag = 'output window, operand 0, single buffered']
    %7 = vsyncpa [#allocation6], 0
    %8 = vsyncpa [#allocation4], 0
    %9 = vsyncpa [#allocation5], 0
    // Predicated region
    $region2: #{tpu_custom_call.1} parent=1 // pred_check
      _
    $region3: #{tpu_custom_call.1} parent=1 // pred_check_branch
      %11 = sbr.rel (0) target = $region5
    $region4: #{tpu_custom_call.1} parent=1 // pred_region
      %s13 = ssub.s32 16, 16
      %14 = vsyncadd [#allocation6], %s13
      %17 = dma.hbm_to_smem %s0, 16, [#allocation3], [#allocation6]
    $region5: #{tpu_custom_call.1} parent=1 // pred_fallthru
      _
    // Predicated region
    $region6: #{tpu_custom_call.1} parent=1 // pred_check
      _
    $region7: #{tpu_custom_call.1} parent=1 // pred_check_branch
      %19 = sbr.rel (0) target = $region9
    $region8: #{tpu_custom_call.1} parent=1 // pred_region
      %s21 = ssub.s32 3072, 3072
      %22 = vsyncadd [#allocation4], %s21
      %s23 = sshll.u32 [#allocation7], 4
      %s24 = int_to_ptr.vmem [resolvable:$true] %s23
      %29 = dma.hbm_to_vmem [thread:$0]  %s1, 3072, %s24, [#allocation4], 128, 128, 8
    $region9: #{tpu_custom_call.1} parent=1 // pred_fallthru
      _
    // Predicated region
    $region10: #{tpu_custom_call.1} parent=1 // pred_check
      _
    $region11: #{tpu_custom_call.1} parent=1 // pred_check_branch
      %31 = sbr.rel (0) target = $region13
    $region12: #{tpu_custom_call.1} parent=1 // pred_region
      %32 = dma.done [#allocation6], 16
    $region13: #{tpu_custom_call.1} parent=1 // pred_fallthru
      _
    // Predicated region
    $region14: #{tpu_custom_call.1} parent=1 // pred_check
      _
    $region15: #{tpu_custom_call.1} parent=1 // pred_check_branch
      %34 = sbr.rel (0) target = $region17
    $region16: #{tpu_custom_call.1} parent=1 // pred_region
      %35 = dma.done [#allocation4], 3072
    $region17: #{tpu_custom_call.1} parent=1 // pred_fallthru
      _
    %36 = sfence
    %s37 = sld [smem:[#allocation3]]
    %s38 = sld [smem:[#allocation3 + $0x1]]
    %s39 = ssub.f32 %s38, %s37
    %p40 = scmp.eq.f32.partialorder %s39, 0.0
    %s41 = scalar_select %p40, 1.0, %s39
    %s42 = smul.f32 %s41, 0.01
    %v43 = vstv %s42
    %v44 = vrcp.pop %v43
    %s45 = vtos %v44
    %s46 = smul.f32 %s45, -0.5
    %s47 = smul.f32 %s46, %s45
    %s48 = smul.f32 %s41, 0.015873017
    loop: start=0, step=1, limit=64
    $region18: #{tpu_custom_call.1} parent=1 // loop_pre_header
      _
    $region19: #{tpu_custom_call.1} parent=1 // loop_header
      %s50 = sphi 0, %s54
      %p51 = scmp.ge.s32.totalorder %s50, 64
    $region20: #{tpu_custom_call.1} parent=1 // loop_header_branch
      %53 = sbr.rel (%p51) target = $region24
    $region21: #{tpu_custom_call.1} parent=1 // loop_body
      %s55 = scvt.s32.f32 %s50
      %s56 = smul.f32 %s55, %s48
      %s57 = sadd.f32 %s37, %s56
      %v58 = vld [vmem:[#allocation7] sm:$0xff]
      %v59 = vld [vmem:[#allocation7 + $0x8] sm:$0xff]
      %v60 = vld [vmem:[#allocation7 + $0x10] sm:$0xff]
      %v61 = vld [vmem:[#allocation7 + $0x18] sm:$0xff]
      %v62 = vld [vmem:[#allocation7 + $0x20] sm:$0xff]
      %v63 = vld [vmem:[#allocation7 + $0x28] sm:$0xff]
      %v64 = vld [vmem:[#allocation7 + $0x30] sm:$0xff]
      %v65 = vld [vmem:[#allocation7 + $0x38] sm:$0xff]
      %v66 = vld [vmem:[#allocation7 + $0x40] sm:$0xff]
      %v67 = vld [vmem:[#allocation7 + $0x48] sm:$0xff]
      %v68 = vld [vmem:[#allocation7 + $0x50] sm:$0xff]
      %v69 = vld [vmem:[#allocation7 + $0x58] sm:$0xff]
      %v70 = vld [vmem:[#allocation7 + $0x60] sm:$0xff]
      %v71 = vld [vmem:[#allocation7 + $0x68] sm:$0xff]
      %v72 = vld [vmem:[#allocation7 + $0x70] sm:$0xff]
      %v73 = vld [vmem:[#allocation7 + $0x78] sm:$0xff]
      %v74 = vld [vmem:[#allocation7 + $0x80] sm:$0xff]
      %v75 = vld [vmem:[#allocation7 + $0x88] sm:$0xff]
      %v76 = vld [vmem:[#allocation7 + $0x90] sm:$0xff]
      %v77 = vld [vmem:[#allocation7 + $0x98] sm:$0xff]
      %v78 = vld [vmem:[#allocation7 + $0xa0] sm:$0xff]
      %v79 = vld [vmem:[#allocation7 + $0xa8] sm:$0xff]
      %v80 = vld [vmem:[#allocation7 + $0xb0] sm:$0xff]
      %v81 = vld [vmem:[#allocation7 + $0xb8] sm:$0xff]
      %v82 = vstv %s57
      %v83 = vsub.f32 %v58, %v82
      %v84 = vsub.f32 %v59, %v82
      %v85 = vsub.f32 %v60, %v82
      %v86 = vsub.f32 %v61, %v82
      %v87 = vsub.f32 %v62, %v82
      %v88 = vsub.f32 %v63, %v82
      %v89 = vsub.f32 %v64, %v82
      %v90 = vsub.f32 %v65, %v82
      %v91 = vsub.f32 %v66, %v82
      %v92 = vsub.f32 %v67, %v82
      %v93 = vsub.f32 %v68, %v82
      %v94 = vsub.f32 %v69, %v82
      %v95 = vsub.f32 %v70, %v82
      %v96 = vsub.f32 %v71, %v82
      %v97 = vsub.f32 %v72, %v82
      %v98 = vsub.f32 %v73, %v82
      %v99 = vsub.f32 %v74, %v82
      %v100 = vsub.f32 %v75, %v82
      %v101 = vsub.f32 %v76, %v82
      %v102 = vsub.f32 %v77, %v82
      %v103 = vsub.f32 %v78, %v82
      %v104 = vsub.f32 %v79, %v82
      %v105 = vsub.f32 %v80, %v82
      %v106 = vsub.f32 %v81, %v82
      %v107 = vmul.f32 %v83, %v83
      %v108 = vmul.f32 %v84, %v84
      %v109 = vmul.f32 %v85, %v85
      %v110 = vmul.f32 %v86, %v86
      %v111 = vmul.f32 %v87, %v87
      %v112 = vmul.f32 %v88, %v88
      %v113 = vmul.f32 %v89, %v89
      %v114 = vmul.f32 %v90, %v90
      %v115 = vmul.f32 %v91, %v91
      %v116 = vmul.f32 %v92, %v92
      %v117 = vmul.f32 %v93, %v93
      %v118 = vmul.f32 %v94, %v94
      %v119 = vmul.f32 %v95, %v95
      %v120 = vmul.f32 %v96, %v96
      %v121 = vmul.f32 %v97, %v97
      %v122 = vmul.f32 %v98, %v98
      %v123 = vmul.f32 %v99, %v99
      %v124 = vmul.f32 %v100, %v100
      %v125 = vmul.f32 %v101, %v101
      %v126 = vmul.f32 %v102, %v102
      %v127 = vmul.f32 %v103, %v103
      %v128 = vmul.f32 %v104, %v104
      %v129 = vmul.f32 %v105, %v105
      %v130 = vmul.f32 %v106, %v106
      %v131 = vstv %s47
      %v132 = vmul.f32 %v131, %v107
      %v133 = vmul.f32 %v131, %v108
      %v134 = vmul.f32 %v131, %v109
      %v135 = vmul.f32 %v131, %v110
      %v136 = vmul.f32 %v131, %v111
      %v137 = vmul.f32 %v131, %v112
      %v138 = vmul.f32 %v131, %v113
      %v139 = vmul.f32 %v131, %v114
      %v140 = vmul.f32 %v131, %v115
      %v141 = vmul.f32 %v131, %v116
      %v142 = vmul.f32 %v131, %v117
      %v143 = vmul.f32 %v131, %v118
      %v144 = vmul.f32 %v131, %v119
      %v145 = vmul.f32 %v131, %v120
      %v146 = vmul.f32 %v131, %v121
      %v147 = vmul.f32 %v131, %v122
      %v148 = vmul.f32 %v131, %v123
      %v149 = vmul.f32 %v131, %v124
      %v150 = vmul.f32 %v131, %v125
      %v151 = vmul.f32 %v131, %v126
      %v152 = vmul.f32 %v131, %v127
      %v153 = vmul.f32 %v131, %v128
      %v154 = vmul.f32 %v131, %v129
      %v155 = vmul.f32 %v131, %v130
      %v156 = vmul.f32 %v132, 1.442695
      %v157 = vpow.pop %v156
      %v158 = vmul.f32 %v133, 1.442695
      %v159 = vpow.pop %v158
      %v160 = vmul.f32 %v134, 1.442695
      %v161 = vpow.pop %v160
      %v162 = vmul.f32 %v135, 1.442695
      %v163 = vpow.pop %v162
      %v164 = vmul.f32 %v136, 1.442695
      %v165 = vpow.pop %v164
      %v166 = vmul.f32 %v137, 1.442695
      %v167 = vpow.pop %v166
      %v168 = vmul.f32 %v138, 1.442695
      %v169 = vpow.pop %v168
      %v170 = vmul.f32 %v139, 1.442695
      %v171 = vpow.pop %v170
      %v172 = vmul.f32 %v140, 1.442695
      %v173 = vpow.pop %v172
      %v174 = vmul.f32 %v141, 1.442695
      %v175 = vpow.pop %v174
      %v176 = vmul.f32 %v142, 1.442695
      %v177 = vpow.pop %v176
      %v178 = vmul.f32 %v143, 1.442695
      %v179 = vpow.pop %v178
      %v180 = vmul.f32 %v144, 1.442695
      %v181 = vpow.pop %v180
      %v182 = vmul.f32 %v145, 1.442695
      %v183 = vpow.pop %v182
      %v184 = vmul.f32 %v146, 1.442695
      %v185 = vpow.pop %v184
      %v186 = vmul.f32 %v147, 1.442695
      %v187 = vpow.pop %v186
      %v188 = vmul.f32 %v148, 1.442695
      %v189 = vpow.pop %v188
      %v190 = vmul.f32 %v149, 1.442695
      %v191 = vpow.pop %v190
      %v192 = vmul.f32 %v150, 1.442695
      %v193 = vpow.pop %v192
      %v194 = vmul.f32 %v151, 1.442695
      %v195 = vpow.pop %v194
      %v196 = vmul.f32 %v152, 1.442695
      %v197 = vpow.pop %v196
      %v198 = vmul.f32 %v153, 1.442695
      %v199 = vpow.pop %v198
      %v200 = vmul.f32 %v154, 1.442695
      %v201 = vpow.pop %v200
      %v202 = vmul.f32 %v155, 1.442695
      %v203 = vpow.pop %v202
      %v204 = vadd.f32 %v157, %v159
      %v205 = vadd.f32 %v204, %v161
      %v206 = vadd.f32 %v205, %v163
      %v207 = vadd.f32 %v206, %v165
      %v208 = vadd.f32 %v207, %v167
      %v209 = vadd.f32 %v208, %v169
      %v210 = vadd.f32 %v209, %v171
      %v211 = vadd.f32 %v210, %v173
      %v212 = vadd.f32 %v211, %v175
      %v213 = vadd.f32 %v212, %v177
      %v214 = vadd.f32 %v213, %v179
      %v215 = vadd.f32 %v214, %v181
      %v216 = vadd.f32 %v215, %v183
      %v217 = vadd.f32 %v216, %v185
      %v218 = vadd.f32 %v217, %v187
      %v219 = vadd.f32 %v218, %v189
      %v220 = vadd.f32 %v219, %v191
      %v221 = vadd.f32 %v220, %v193
      %v222 = vadd.f32 %v221, %v195
      %v223 = vadd.f32 %v222, %v197
      %v224 = vadd.f32 %v223, %v199
      %v225 = vadd.f32 %v224, %v201
      %v226 = vadd.f32 %v225, %v203
      %v227 = vrot.slane %v226, 4
      %v228 = vadd.f32 %v226, %v227
      %v229 = vrot.slane %v228, 2
      %v230 = vadd.f32 %v228, %v229
      %v231 = vrot.slane %v230, 1
      %v232 = vadd.f32 %v230, %v231
      %v233 = vmul.f32 %v232, 0.0052083335
      %s234 = scalar_lea.vmem [#allocation2], %s50
      %235 = vst [vmem:[%s234] sm:$0x1] %v233
    $region22: #{tpu_custom_call.1} parent=1 // loop_footer
      %s54 = sadd.s32 1, %s50
    $region23: #{tpu_custom_call.1} parent=1 // loop_footer_branch
      %49 = sbr.rel target = $region19
    $region24: #{tpu_custom_call.1} parent=1 // loop_exit
      _
    %v236 = vld [vmem:[#allocation2] sm:$0xff]
    %v237 = vld [vmem:[#allocation2 + $0x8] sm:$0xff]
    %v238 = vld [vmem:[#allocation2 + $0x10] sm:$0xff]
    %v239 = vld [vmem:[#allocation2 + $0x18] sm:$0xff]
    %v240 = vld [vmem:[#allocation2 + $0x20] sm:$0xff]
    %v241 = vld [vmem:[#allocation2 + $0x28] sm:$0xff]
    %v242 = vld [vmem:[#allocation2 + $0x30] sm:$0xff]
    %v243 = vld [vmem:[#allocation2 + $0x38] sm:$0xff]
    %v244 = vadd.f32 %v236, %v237
    %v245 = vadd.f32 %v244, %v238
    %v246 = vadd.f32 %v245, %v239
    %v247 = vadd.f32 %v246, %v240
    %v248 = vadd.f32 %v247, %v241
    %v249 = vadd.f32 %v248, %v242
    %v250 = vadd.f32 %v249, %v243
    %v251 = vrot.slane %v250, 4
    %v252 = vadd.f32 %v250, %v251
    %v253 = vrot.slane %v252, 2
    %v254 = vadd.f32 %v252, %v253
    %v255 = vrot.slane %v254, 1
    %v256 = vadd.f32 %v254, %v255
    %v257 = vadd.f32 %v256, 1e-19
    %v258 = vrcp.pop %v257
    %v259 = vmul.f32 %v236, %v258
    %v260 = vmul.f32 %v237, %v258
    %v261 = vmul.f32 %v238, %v258
    %v262 = vmul.f32 %v239, %v258
    %v263 = vmul.f32 %v240, %v258
    %v264 = vmul.f32 %v241, %v258
    %v265 = vmul.f32 %v242, %v258
    %v266 = vmul.f32 %v243, %v258
    %v267 = vadd.f32 %v259, 1e-19
    %v268 = vadd.f32 %v260, 1e-19
    %v269 = vadd.f32 %v261, 1e-19
    %v270 = vadd.f32 %v262, 1e-19
    %v271 = vadd.f32 %v263, 1e-19
    %v272 = vadd.f32 %v264, 1e-19
    %v273 = vadd.f32 %v265, 1e-19
    %v274 = vadd.f32 %v266, 1e-19
    %v275 = vlog2.pop %v267
    %v276 = vmul.f32 %v275, 0.6931472
    %v277 = vlog2.pop %v268
    %v278 = vmul.f32 %v277, 0.6931472
    %v279 = vlog2.pop %v269
    %v280 = vmul.f32 %v279, 0.6931472
    %v281 = vlog2.pop %v270
    %v282 = vmul.f32 %v281, 0.6931472
    %v283 = vlog2.pop %v271
    %v284 = vmul.f32 %v283, 0.6931472
    %v285 = vlog2.pop %v272
    %v286 = vmul.f32 %v285, 0.6931472
    %v287 = vlog2.pop %v273
    %v288 = vmul.f32 %v287, 0.6931472
    %v289 = vlog2.pop %v274
    %v290 = vmul.f32 %v289, 0.6931472
    %v291 = vmul.f32 %v267, %v276
    %v292 = vmul.f32 %v268, %v278
    %v293 = vmul.f32 %v269, %v280
    %v294 = vmul.f32 %v270, %v282
    %v295 = vmul.f32 %v271, %v284
    %v296 = vmul.f32 %v272, %v286
    %v297 = vmul.f32 %v273, %v288
    %v298 = vmul.f32 %v274, %v290
    %v299 = vadd.f32 %v291, %v292
    %v300 = vadd.f32 %v299, %v293
    %v301 = vadd.f32 %v300, %v294
    %v302 = vadd.f32 %v301, %v295
    %v303 = vadd.f32 %v302, %v296
    %v304 = vadd.f32 %v303, %v297
    %v305 = vadd.f32 %v304, %v298
    %v306 = vrot.slane %v305, 4
    %v307 = vadd.f32 %v305, %v306
    %v308 = vrot.slane %v307, 2
    %v309 = vadd.f32 %v307, %v308
    %v310 = vrot.slane %v309, 1
    %v311 = vadd.f32 %v309, %v310
    %v312 = vsub.f32 0.0, %v311
    %313 = vst [vmem:[#allocation8] sm:$0x1] %v312
    // Predicated region
    $region25: #{tpu_custom_call.1} parent=1 // pred_check
      _
    $region26: #{tpu_custom_call.1} parent=1 // pred_check_branch
      %315 = sbr.rel (0) target = $region28
    $region27: #{tpu_custom_call.1} parent=1 // pred_region
      %s317 = ssub.s32 16, 16
      %318 = vsyncadd [#allocation5], %s317
      %s320 = sshll.u32 [#allocation8], 4
      %s321 = int_to_ptr.vmem [resolvable:$true] %s320
      %323 = dma.vmem_to_hbm [thread:$0]  %s321, 16, %s2, [#allocation5]
    $region28: #{tpu_custom_call.1} parent=1 // pred_fallthru
      _
    // Predicated region
    $region29: #{tpu_custom_call.1} parent=1 // pred_check
      _
    $region30: #{tpu_custom_call.1} parent=1 // pred_check_branch
      %325 = sbr.rel (0) target = $region32
    $region31: #{tpu_custom_call.1} parent=1 // pred_region
      %326 = dma.done [#allocation5], 16
    $region32: #{tpu_custom_call.1} parent=1 // pred_fallthru
      _
    %327 = vsyncpa [#allocation4], 1
    %328 = vsyncpa [#allocation5], 1
    %329 = vsyncpa [#allocation6], 1

</llo_original>
